<compile_context>
chip_gen: v5e
topology: v5e:2x2
jax: 0.10.0
libtpu: 0.0.40
codegen_flags: <defaults>
</compile_context>

<pallas_src>
import jax
import jax.numpy as jnp
from jax.experimental import pallas as pl
from jax.experimental.pallas import tpu as pltpu

EPS = 1e-5  # nn.BatchNorm2d default


def _banded_conv_weights(w_oihw, width):
    """OIHW 3x3 conv weights -> one fused banded matrix of shape (3*W*Cin, W*Cout).

    Row index ky*W*Cin + wi*Cin + ci, column index wo*Cout + co holds w[co, ci, ky, kx] with
    kx = wi - wo + 1 when 0 <= kx <= 2, else 0.  Matmul of the lane-concat of the three
    height-shifted padded row views (BH, 3*W*Cin) with this matrix gives the full conv output
    rows (BH, W*Cout); width zero-padding is implicit in the clipped band.
    """
    c_out, c_in = w_oihw.shape[0], w_oihw.shape[1]
    wt = jnp.transpose(w_oihw, (2, 3, 1, 0))                     # [ky, kx, ci, co]
    wi = jnp.arange(width)[:, None]
    wo = jnp.arange(width)[None, :]
    kx = wi - wo + 1                                             # (W, W)
    valid = ((kx >= 0) & (kx <= 2)).astype(wt.dtype)
    blocks = wt[:, jnp.clip(kx, 0, 2)]                           # (3, W, W, Cin, Cout)
    blocks = blocks * valid[None, :, :, None, None]
    blocks = jnp.transpose(blocks, (0, 1, 3, 2, 4))              # (ky, wi, ci, wo, co)
    return blocks.reshape(3 * width * c_in, width * c_out)


def _make_convblock_kernel(B, H, W, Cin, Cout, ph, pw):
    Hp = H // ph
    Lin, L = W * Cin, W * Cout          # lane widths of the input / activation slabs
    BH = B * H                          # slab rows

    def kernel(x_ref, m1_ref, m2_ref, p_ref, pool_ref,
               g1_ref, b1_ref, g2_ref, b2_ref,
               out_ref, xpad_ref, ypad_ref):
        f32 = jnp.float32

        def conv3x3(pad_ref, interior, band_ref, lane_in):
            # Height zero-pad: write only the two halo rows (interior written once).
            zero_row = jnp.zeros((B, 1, lane_in), pad_ref.dtype)
            pad_ref[:, 0:1, :] = zero_row
            pad_ref[:, H + 1:H + 2, :] = zero_row
            pad_ref[:, 1:H + 1, :] = interior
            # Fused ky taps: one (BH, 3*lane_in) x (3*lane_in, L) matmul per conv; kx taps
            # and width zero-padding live inside the band matrix.
            lhs = jnp.concatenate(
                [pad_ref[:, ky:ky + H, :].reshape(BH, lane_in) for ky in range(3)],
                axis=1)
            return jnp.dot(lhs, band_ref[...], preferred_element_type=f32)

        def bn_relu(acc, gamma_l, beta_l):
            # Training-mode batch stats (biased variance, like PyTorch normalization).
            # Row reduce on the XLU (free slot), then a single small (2,L)x(L,L) matmul with
            # the precomputed per-lane channel-group-sum matrix (1/N folded in) replaces the
            # old fold+spread matmul chain.  All BN/ReLU math stays f32.
            s1 = jnp.sum(acc, axis=0, keepdims=True)             # (1, L) sum
            s2 = jnp.sum(acc * acc, axis=0, keepdims=True)       # (1, L) sum of squares
            lane_stats = jnp.dot(jnp.concatenate([s1, s2], axis=0), p_ref[...],
                                 preferred_element_type=f32)     # (2, L): mean, E[x^2]
            mean_l = lane_stats[0:1, :]
            ex2_l = lane_stats[1:2, :]
            # NOTE: single-pass E[x^2]-mean^2 (clamped); fine at these magnitudes/tolerance.
            var_l = jnp.maximum(ex2_l - mean_l * mean_l, 0.0)
            scale_l = gamma_l * jax.lax.rsqrt(var_l + EPS)
            shift_l = beta_l - mean_l * scale_l
            return jnp.maximum(acc * scale_l + shift_l, 0.0)

        y1 = bn_relu(conv3x3(xpad_ref, x_ref[...], m1_ref, Lin),
                     g1_ref[...], b1_ref[...])
        y2 = bn_relu(conv3x3(ypad_ref, y1.reshape(B, H, L).astype(ypad_ref.dtype),
                             m2_ref, L),
                     g2_ref[...], b2_ref[...])

        # Avg pool: sum ph adjacent rows (sublane axis), then pool pw adjacent lane blocks
        # (divide folded in) via the precomputed, zero-padded (L, out_lanes) pool matrix.
        # out_lanes is a multiple of 128 -> fully lane-dense stores.
        row_sum = jnp.sum(y2.reshape(B * Hp, ph, L), axis=1)     # (B*Hp, L)
        out_ref[...] = jnp.dot(row_sum, pool_ref[...], preferred_element_type=f32)

    return kernel


def conv_block_forward(x_nchw, w1, w2, g1, b1, g2, b2,
                       pool_size=(2, 2), pool_type='avg',
                       mxu_dtype=jnp.float32, nchw_output=True):
    """Matches ConvBlock.forward (training-mode BN).

    mxu_dtype=jnp.bfloat16 runs the conv matmuls on the native bf16 MXU path (v6e/v7x) and
    halves the band-matrix DMA; accumulation and all BN/ReLU math stay f32.  Default f32 so
    the result matches the f32 PyTorch forward to tight tolerance.
    nchw_output=False returns the lane-dense NHWC pooled tensor (skips the XLA transpose).
    """
    if pool_type != 'avg':
        # TODO(synk): 'max' / 'avg+max' pooling branches not implemented (module default is 'avg').
        raise NotImplementedError("only pool_type='avg' is implemented")
    B, Cin, H, W = x_nchw.shape
    Cout = w1.shape[0]
    ph, pw = pool_size
    Hp, Wp = H // ph, W // pw
    Lin, L = W * Cin, W * Cout
    N = B * H * W
    pooled_lanes = Wp * Cout
    out_lanes = pooled_lanes if pooled_lanes % 128 == 0 else (pooled_lanes // 128 + 1) * 128

    # Layout-only glue (tiny): NCHW -> lane-dense (B, H, W*Cin) rows; fused band matrices.
    x_rows = jnp.transpose(x_nchw, (0, 2, 3, 1)).reshape(B, H, Lin).astype(mxu_dtype)
    m1 = _banded_conv_weights(w1.astype(jnp.float32), W).astype(mxu_dtype)   # (3*Lin, L)
    m2 = _banded_conv_weights(w2.astype(jnp.float32), W).astype(mxu_dtype)   # (3*L,   L)

    # Constant operands (pure functions of the shape) hoisted out of the kernel.
    lane = jnp.arange(L)
    p_mat = ((lane[:, None] % Cout) == (lane[None, :] % Cout)).astype(jnp.float32) / float(N)
    q = jnp.arange(L)[:, None]
    p = jnp.arange(out_lanes)[None, :]
    pool_mat = (((q // Cout) // pw == p // Cout)
                & (q % Cout == p % Cout)
                & (p < pooled_lanes)).astype(jnp.float32) / float(ph * pw)
    g1l = jnp.tile(g1.astype(jnp.float32), W).reshape(1, L)
    b1l = jnp.tile(b1.astype(jnp.float32), W).reshape(1, L)
    g2l = jnp.tile(g2.astype(jnp.float32), W).reshape(1, L)
    b2l = jnp.tile(b2.astype(jnp.float32), W).reshape(1, L)

    vmem = pltpu.MemorySpace.VMEM
    # TODO(synk): single grid step (all operands < 1 MiB of VMEM at this shape).  Before
    # scaling B/H/W/C (esp. on v7x with 64 MiB VMEM and 2 TCs), add a leading 'parallel'
    # batch/row-band grid axis with halos and a two-pass (partial-stats + normalize) BN.
    out2d = pl.pallas_call(
        _make_convblock_kernel(B, H, W, Cin, Cout, ph, pw),
        out_shape=jax.ShapeDtypeStruct((B * Hp, out_lanes), jnp.float32),
        in_specs=[pl.BlockSpec(memory_space=vmem)] * 9,
        out_specs=pl.BlockSpec(memory_space=vmem),
        scratch_shapes=[
            pltpu.VMEM((B, H + 2, Lin), mxu_dtype),    # height-padded conv1 input rows
            pltpu.VMEM((B, H + 2, L), mxu_dtype),      # height-padded conv2 input rows
        ],
        compiler_params=pltpu.CompilerParams(vmem_limit_bytes=16 * 1024 * 1024),
    )(x_rows, m1, m2, p_mat, pool_mat, g1l, b1l, g2l, b2l)

    pooled = out2d[:, :pooled_lanes].reshape(B, Hp, Wp, Cout)
    if not nchw_output:
        return pooled                                   # lane-dense NHWC, no transpose
    return jnp.transpose(pooled, (0, 3, 1, 2))          # PyTorch NCHW convention


def ref_convblock(x_nchw, w1, w2, g1, b1, g2, b2, pool_size=(2, 2)):
    """Pure-JAX reference replicating the PyTorch forward (training-mode BN)."""
    def conv(x, w):
        return jax.lax.conv_general_dilated(
            x, w, window_strides=(1, 1), padding=((1, 1), (1, 1)),
            dimension_numbers=('NCHW', 'OIHW', 'NCHW'))

    def bn_relu(x, g, b):
        mean = x.mean(axis=(0, 2, 3), keepdims=True)
        var = ((x - mean) ** 2).mean(axis=(0, 2, 3), keepdims=True)
        xh = (x - mean) * jax.lax.rsqrt(var + EPS)
        return jnp.maximum(xh * g.reshape(1, -1, 1, 1) + b.reshape(1, -1, 1, 1), 0.0)

    y = bn_relu(conv(x_nchw, w1), g1, b1)
    y = bn_relu(conv(y, w2), g2, b2)
    B, C, H, W = y.shape
    ph, pw = pool_size
    return y.reshape(B, C, H // ph, ph, W // pw, pw).mean(axis=(3, 5))


if __name__ == "__main__":
    B, Cin, Cout, H, W = 2, 4, 8, 16, 16
    key = jax.random.PRNGKey(0)
    k1, k2, kx = jax.random.split(key, 3)

    def xavier_uniform(k, shape):  # matches nn.init.xavier_uniform_ bounds
        fan_in = shape[1] * shape[2] * shape[3]
        fan_out = shape[0] * shape[2] * shape[3]
        bound = (6.0 / (fan_in + fan_out)) ** 0.5
        return jax.random.uniform(k, shape, jnp.float32, -bound, bound)

    w1 = xavier_uniform(k1, (Cout, Cin, 3, 3))
    w2 = xavier_uniform(k2, (Cout, Cout, 3, 3))
    g1 = jnp.ones((Cout,), jnp.float32)   # init_bn: weight=1
    b1 = jnp.zeros((Cout,), jnp.float32)  # init_bn: bias=0
    g2 = jnp.ones((Cout,), jnp.float32)
    b2 = jnp.zeros((Cout,), jnp.float32)
    x = jax.random.normal(kx, (B, Cin, H, W), jnp.float32)

    out = conv_block_forward(x, w1, w2, g1, b1, g2, b2)
    out = jax.block_until_ready(out)

    ref = ref_convblock(x, w1, w2, g1, b1, g2, b2)
    assert out.shape == (B, Cout, H // 2, W // 2), out.shape
    max_err = float(jnp.max(jnp.abs(out - ref)))
    assert jnp.allclose(out, ref, atol=1e-3, rtol=1e-3), max_err
    print("KERNEL_OK")
</pallas_src>

<mosaic_0001>
module attributes {stable_mosaic.version = 11 : i64} {
  func.func @kernel(%arg0: memref<2x16x64xf32, #tpu.memory_space<vmem>>, %arg1: memref<192x128xf32, #tpu.memory_space<vmem>>, %arg2: memref<384x128xf32, #tpu.memory_space<vmem>>, %arg3: memref<128x128xf32, #tpu.memory_space<vmem>>, %arg4: memref<128x128xf32, #tpu.memory_space<vmem>>, %arg5: memref<1x128xf32, #tpu.memory_space<vmem>>, %arg6: memref<1x128xf32, #tpu.memory_space<vmem>>, %arg7: memref<1x128xf32, #tpu.memory_space<vmem>>, %arg8: memref<1x128xf32, #tpu.memory_space<vmem>>, %arg9: memref<16x128xf32, #tpu.memory_space<vmem>>, %arg10: memref<2x18x64xf32, #tpu.memory_space<vmem>>, %arg11: memref<2x18x128xf32, #tpu.memory_space<vmem>>) attributes {dimension_semantics = [], scalar_prefetch = 0 : i64, scratch_operands = 2 : i64, tpu.core_type = #tpu.core_type<tc>} {
    %c0 = arith.constant 0 : index
    %c0_0 = arith.constant 0 : index
    %c0_1 = arith.constant 0 : index
    %0 = vector.load %arg0[%c0, %c0_0, %c0_1] : memref<2x16x64xf32, #tpu.memory_space<vmem>>, vector<2x16x64xf32>
    %cst = arith.constant 0.000000e+00 : f32
    %1 = vector.broadcast %cst : f32 to vector<2x1x64xf32>
    %c0_2 = arith.constant 0 : index
    %c0_3 = arith.constant 0 : index
    %c0_4 = arith.constant 0 : index
    %2 = vector.load %arg10[%c0_2, %c0_3, %c0_4] : memref<2x18x64xf32, #tpu.memory_space<vmem>>, vector<2x1x64xf32>
    tpu.vector_store %arg10[%c0_2, %c0_3, %c0_4], %1 {strides = array<i32>} : memref<2x18x64xf32, #tpu.memory_space<vmem>>, vector<2x1x64xf32>,
    %c0_5 = arith.constant 0 : index
    %c17 = arith.constant 17 : index
    %c0_6 = arith.constant 0 : index
    %3 = vector.load %arg10[%c0_5, %c17, %c0_6] : memref<2x18x64xf32, #tpu.memory_space<vmem>>, vector<2x1x64xf32>
    tpu.vector_store %arg10[%c0_5, %c17, %c0_6], %1 {strides = array<i32>} : memref<2x18x64xf32, #tpu.memory_space<vmem>>, vector<2x1x64xf32>,
    %c0_7 = arith.constant 0 : index
    %c1 = arith.constant 1 : index
    %c0_8 = arith.constant 0 : index
    %4 = vector.load %arg10[%c0_7, %c1, %c0_8] : memref<2x18x64xf32, #tpu.memory_space<vmem>>, vector<2x16x64xf32>
    tpu.vector_store %arg10[%c0_7, %c1, %c0_8], %0 {strides = array<i32>} : memref<2x18x64xf32, #tpu.memory_space<vmem>>, vector<2x16x64xf32>,
    %c0_9 = arith.constant 0 : index
    %c0_10 = arith.constant 0 : index
    %c0_11 = arith.constant 0 : index
    %5 = vector.load %arg10[%c0_9, %c0_10, %c0_11] : memref<2x18x64xf32, #tpu.memory_space<vmem>>, vector<2x16x64xf32>
    %6 = vector.shape_cast %5 : vector<2x16x64xf32> to vector<32x64xf32>
    %c0_12 = arith.constant 0 : index
    %c1_13 = arith.constant 1 : index
    %c0_14 = arith.constant 0 : index
    %7 = vector.load %arg10[%c0_12, %c1_13, %c0_14] : memref<2x18x64xf32, #tpu.memory_space<vmem>>, vector<2x16x64xf32>
    %8 = vector.shape_cast %7 : vector<2x16x64xf32> to vector<32x64xf32>
    %c0_15 = arith.constant 0 : index
    %c2 = arith.constant 2 : index
    %c0_16 = arith.constant 0 : index
    %9 = vector.load %arg10[%c0_15, %c2, %c0_16] : memref<2x18x64xf32, #tpu.memory_space<vmem>>, vector<2x16x64xf32>
    %10 = vector.shape_cast %9 : vector<2x16x64xf32> to vector<32x64xf32>
    %11 = tpu.concatenate %6, %8, %10 in 1 : vector<32x64xf32>, vector<32x64xf32>, vector<32x64xf32> -> vector<32x192xf32>
    %c0_17 = arith.constant 0 : index
    %c0_18 = arith.constant 0 : index
    %12 = vector.load %arg1[%c0_17, %c0_18] : memref<192x128xf32, #tpu.memory_space<vmem>>, vector<192x128xf32>
    %cst_19 = arith.constant dense<0.000000e+00> : vector<32x128xf32>
    %13 = tpu.matmul %11, %12, %cst_19 {dimension_numbers = #tpu.dot_dimension_numbers<[1], [0], [0], [1], [0, 0, 1, 1], [], []>} : vector<32x192xf32>, vector<192x128xf32>, vector<32x128xf32> -> vector<32x128xf32>
    %c0_20 = arith.constant 0 : index
    %c0_21 = arith.constant 0 : index
    %14 = vector.load %arg5[%c0_20, %c0_21] : memref<1x128xf32, #tpu.memory_space<vmem>>, vector<1x128xf32>
    %c0_22 = arith.constant 0 : index
    %c0_23 = arith.constant 0 : index
    %15 = vector.load %arg6[%c0_22, %c0_23] : memref<1x128xf32, #tpu.memory_space<vmem>>, vector<1x128xf32>
    %cst_24 = arith.constant dense<0.000000e+00> : vector<128xf32>
    %16 = vector.multi_reduction <add>, %13, %cst_24 [0] : vector<32x128xf32> to vector<128xf32>
    %17 = vector.shape_cast %16 : vector<128xf32> to vector<1x128xf32>
    %18 = arith.mulf %13, %13 : vector<32x128xf32>
    %cst_25 = arith.constant dense<0.000000e+00> : vector<128xf32>
    %19 = vector.multi_reduction <add>, %18, %cst_25 [0] : vector<32x128xf32> to vector<128xf32>
    %20 = vector.shape_cast %19 : vector<128xf32> to vector<1x128xf32>
    %21 = tpu.concatenate %17, %20 in 0 : vector<1x128xf32>, vector<1x128xf32> -> vector<2x128xf32>
    %c0_26 = arith.constant 0 : index
    %c0_27 = arith.constant 0 : index
    %22 = vector.load %arg3[%c0_26, %c0_27] : memref<128x128xf32, #tpu.memory_space<vmem>>, vector<128x128xf32>
    %cst_28 = arith.constant dense<0.000000e+00> : vector<2x128xf32>
    %23 = tpu.matmul %21, %22, %cst_28 {dimension_numbers = #tpu.dot_dimension_numbers<[1], [0], [0], [1], [0, 0, 1, 1], [], []>} : vector<2x128xf32>, vector<128x128xf32>, vector<2x128xf32> -> vector<2x128xf32>
    %24 = vector.extract_strided_slice %23 {offsets = [0, 0], sizes = [1, 128], strides = [1, 1]} : vector<2x128xf32> to vector<1x128xf32>
    %25 = vector.extract_strided_slice %23 {offsets = [1, 0], sizes = [1, 128], strides = [1, 1]} : vector<2x128xf32> to vector<1x128xf32>
    %26 = arith.mulf %24, %24 : vector<1x128xf32>
    %27 = arith.subf %25, %26 : vector<1x128xf32>
    %cst_29 = arith.constant 0.000000e+00 : f32
    %28 = vector.broadcast %cst_29 : f32 to vector<1x128xf32>
    %29 = arith.maximumf %27, %28 : vector<1x128xf32>
    %cst_30 = arith.constant 9.99999974E-6 : f32
    %30 = vector.broadcast %cst_30 : f32 to vector<1x128xf32>
    %31 = arith.addf %29, %30 : vector<1x128xf32>
    %32 = math.rsqrt %31 : vector<1x128xf32>
    %33 = arith.mulf %14, %32 : vector<1x128xf32>
    %34 = arith.mulf %24, %33 : vector<1x128xf32>
    %35 = arith.subf %15, %34 : vector<1x128xf32>
    %36 = vector.broadcast %33 : vector<1x128xf32> to vector<32x128xf32>
    %37 = arith.mulf %13, %36 : vector<32x128xf32>
    %38 = vector.broadcast %35 : vector<1x128xf32> to vector<32x128xf32>
    %39 = arith.addf %37, %38 : vector<32x128xf32>
    %cst_31 = arith.constant 0.000000e+00 : f32
    %40 = vector.broadcast %cst_31 : f32 to vector<32x128xf32>
    %41 = arith.maximumf %39, %40 : vector<32x128xf32>
    %42 = vector.shape_cast %41 : vector<32x128xf32> to vector<2x16x128xf32>
    %cst_32 = arith.constant 0.000000e+00 : f32
    %43 = vector.broadcast %cst_32 : f32 to vector<2x1x128xf32>
    %c0_33 = arith.constant 0 : index
    %c0_34 = arith.constant 0 : index
    %c0_35 = arith.constant 0 : index
    %44 = vector.load %arg11[%c0_33, %c0_34, %c0_35] : memref<2x18x128xf32, #tpu.memory_space<vmem>>, vector<2x1x128xf32>
    tpu.vector_store %arg11[%c0_33, %c0_34, %c0_35], %43 {strides = array<i32>} : memref<2x18x128xf32, #tpu.memory_space<vmem>>, vector<2x1x128xf32>,
    %c0_36 = arith.constant 0 : index
    %c17_37 = arith.constant 17 : index
    %c0_38 = arith.constant 0 : index
    %45 = vector.load %arg11[%c0_36, %c17_37, %c0_38] : memref<2x18x128xf32, #tpu.memory_space<vmem>>, vector<2x1x128xf32>
    tpu.vector_store %arg11[%c0_36, %c17_37, %c0_38], %43 {strides = array<i32>} : memref<2x18x128xf32, #tpu.memory_space<vmem>>, vector<2x1x128xf32>,
    %c0_39 = arith.constant 0 : index
    %c1_40 = arith.constant 1 : index
    %c0_41 = arith.constant 0 : index
    %46 = vector.load %arg11[%c0_39, %c1_40, %c0_41] : memref<2x18x128xf32, #tpu.memory_space<vmem>>, vector<2x16x128xf32>
    tpu.vector_store %arg11[%c0_39, %c1_40, %c0_41], %42 {strides = array<i32>} : memref<2x18x128xf32, #tpu.memory_space<vmem>>, vector<2x16x128xf32>,
    %c0_42 = arith.constant 0 : index
    %c0_43 = arith.constant 0 : index
    %c0_44 = arith.constant 0 : index
    %47 = vector.load %arg11[%c0_42, %c0_43, %c0_44] : memref<2x18x128xf32, #tpu.memory_space<vmem>>, vector<2x16x128xf32>
    %48 = vector.shape_cast %47 : vector<2x16x128xf32> to vector<32x128xf32>
    %c0_45 = arith.constant 0 : index
    %c1_46 = arith.constant 1 : index
    %c0_47 = arith.constant 0 : index
    %49 = vector.load %arg11[%c0_45, %c1_46, %c0_47] : memref<2x18x128xf32, #tpu.memory_space<vmem>>, vector<2x16x128xf32>
    %50 = vector.shape_cast %49 : vector<2x16x128xf32> to vector<32x128xf32>
    %c0_48 = arith.constant 0 : index
    %c2_49 = arith.constant 2 : index
    %c0_50 = arith.constant 0 : index
    %51 = vector.load %arg11[%c0_48, %c2_49, %c0_50] : memref<2x18x128xf32, #tpu.memory_space<vmem>>, vector<2x16x128xf32>
    %52 = vector.shape_cast %51 : vector<2x16x128xf32> to vector<32x128xf32>
    %53 = tpu.concatenate %48, %50, %52 in 1 : vector<32x128xf32>, vector<32x128xf32>, vector<32x128xf32> -> vector<32x384xf32>
    %c0_51 = arith.constant 0 : index
    %c0_52 = arith.constant 0 : index
    %54 = vector.load %arg2[%c0_51, %c0_52] : memref<384x128xf32, #tpu.memory_space<vmem>>, vector<384x128xf32>
    %cst_53 = arith.constant dense<0.000000e+00> : vector<32x128xf32>
    %55 = tpu.matmul %53, %54, %cst_53 {dimension_numbers = #tpu.dot_dimension_numbers<[1], [0], [0], [1], [0, 0, 1, 1], [], []>} : vector<32x384xf32>, vector<384x128xf32>, vector<32x128xf32> -> vector<32x128xf32>
    %c0_54 = arith.constant 0 : index
    %c0_55 = arith.constant 0 : index
    %56 = vector.load %arg7[%c0_54, %c0_55] : memref<1x128xf32, #tpu.memory_space<vmem>>, vector<1x128xf32>
    %c0_56 = arith.constant 0 : index
    %c0_57 = arith.constant 0 : index
    %57 = vector.load %arg8[%c0_56, %c0_57] : memref<1x128xf32, #tpu.memory_space<vmem>>, vector<1x128xf32>
    %cst_58 = arith.constant dense<0.000000e+00> : vector<128xf32>
    %58 = vector.multi_reduction <add>, %55, %cst_58 [0] : vector<32x128xf32> to vector<128xf32>
    %59 = vector.shape_cast %58 : vector<128xf32> to vector<1x128xf32>
    %60 = arith.mulf %55, %55 : vector<32x128xf32>
    %cst_59 = arith.constant dense<0.000000e+00> : vector<128xf32>
    %61 = vector.multi_reduction <add>, %60, %cst_59 [0] : vector<32x128xf32> to vector<128xf32>
    %62 = vector.shape_cast %61 : vector<128xf32> to vector<1x128xf32>
    %63 = tpu.concatenate %59, %62 in 0 : vector<1x128xf32>, vector<1x128xf32> -> vector<2x128xf32>
    %c0_60 = arith.constant 0 : index
    %c0_61 = arith.constant 0 : index
    %64 = vector.load %arg3[%c0_60, %c0_61] : memref<128x128xf32, #tpu.memory_space<vmem>>, vector<128x128xf32>
    %cst_62 = arith.constant dense<0.000000e+00> : vector<2x128xf32>
    %65 = tpu.matmul %63, %64, %cst_62 {dimension_numbers = #tpu.dot_dimension_numbers<[1], [0], [0], [1], [0, 0, 1, 1], [], []>} : vector<2x128xf32>, vector<128x128xf32>, vector<2x128xf32> -> vector<2x128xf32>
    %66 = vector.extract_strided_slice %65 {offsets = [0, 0], sizes = [1, 128], strides = [1, 1]} : vector<2x128xf32> to vector<1x128xf32>
    %67 = vector.extract_strided_slice %65 {offsets = [1, 0], sizes = [1, 128], strides = [1, 1]} : vector<2x128xf32> to vector<1x128xf32>
    %68 = arith.mulf %66, %66 : vector<1x128xf32>
    %69 = arith.subf %67, %68 : vector<1x128xf32>
    %cst_63 = arith.constant 0.000000e+00 : f32
    %70 = vector.broadcast %cst_63 : f32 to vector<1x128xf32>
    %71 = arith.maximumf %69, %70 : vector<1x128xf32>
    %cst_64 = arith.constant 9.99999974E-6 : f32
    %72 = vector.broadcast %cst_64 : f32 to vector<1x128xf32>
    %73 = arith.addf %71, %72 : vector<1x128xf32>
    %74 = math.rsqrt %73 : vector<1x128xf32>
    %75 = arith.mulf %56, %74 : vector<1x128xf32>
    %76 = arith.mulf %66, %75 : vector<1x128xf32>
    %77 = arith.subf %57, %76 : vector<1x128xf32>
    %78 = vector.broadcast %75 : vector<1x128xf32> to vector<32x128xf32>
    %79 = arith.mulf %55, %78 : vector<32x128xf32>
    %80 = vector.broadcast %77 : vector<1x128xf32> to vector<32x128xf32>
    %81 = arith.addf %79, %80 : vector<32x128xf32>
    %cst_65 = arith.constant 0.000000e+00 : f32
    %82 = vector.broadcast %cst_65 : f32 to vector<32x128xf32>
    %83 = arith.maximumf %81, %82 : vector<32x128xf32>
    %84 = vector.shape_cast %83 : vector<32x128xf32> to vector<16x2x128xf32>
    %cst_66 = arith.constant dense<0.000000e+00> : vector<16x128xf32>
    %85 = vector.multi_reduction <add>, %84, %cst_66 [1] : vector<16x2x128xf32> to vector<16x128xf32>
    %c0_67 = arith.constant 0 : index
    %c0_68 = arith.constant 0 : index
    %86 = vector.load %arg4[%c0_67, %c0_68] : memref<128x128xf32, #tpu.memory_space<vmem>>, vector<128x128xf32>
    %cst_69 = arith.constant dense<0.000000e+00> : vector<16x128xf32>
    %87 = tpu.matmul %85, %86, %cst_69 {dimension_numbers = #tpu.dot_dimension_numbers<[1], [0], [0], [1], [0, 0, 1, 1], [], []>} : vector<16x128xf32>, vector<128x128xf32>, vector<16x128xf32> -> vector<16x128xf32>
    %c0_70 = arith.constant 0 : index
    %c0_71 = arith.constant 0 : index
    %88 = vector.load %arg9[%c0_70, %c0_71] : memref<16x128xf32, #tpu.memory_space<vmem>>, vector<16x128xf32>
    tpu.vector_store %arg9[%c0_70, %c0_71], %87 {strides = array<i32>} : memref<16x128xf32, #tpu.memory_space<vmem>>, vector<16x128xf32>,
    return
  }
}

</mosaic_0001>

<llo_original>
// kernel: tpu_custom_call.1
$region0: #{tpu_custom_call.1}
  #allocation0 [shape = 'u32[]', space=smem, size = 0x4, offset = 0x4, fixed_abs, tag = 'smem constant byte address 0x4 - core index']
  #allocation1 [shape = 'u32[72,128]{1,0:T(1,128)}', space=vmem, size = 0x9000, scoped, tag = 'internal scratch']
  #allocation2 [shape = 'f32[2,18,64]{2,1,0:T(8,128)}', space=vmem, size = 0x6000, scoped, tag = 'scratch operand']
  #allocation3 [shape = 'f32[2,18,128]{2,1,0:T(8,128)}', space=vmem, size = 0x6000, scoped, tag = 'scratch operand']
  %s0 = inlined_call_operand.hbm [shape: f32[2,16,64], index: 0, kind: input, shape index: {}]
  %s1 = inlined_call_operand.hbm [shape: f32[192,128], index: 1, kind: input, shape index: {}]
  %s2 = inlined_call_operand.hbm [shape: f32[384,128], index: 2, kind: input, shape index: {}]
  %s3 = inlined_call_operand.hbm [shape: f32[128,128], index: 3, kind: input, shape index: {}]
  %s4 = inlined_call_operand.hbm [shape: f32[128,128], index: 4, kind: input, shape index: {}]
  %s5 = inlined_call_operand.vmem [shape: f32[1,128], index: 5, kind: input, shape index: {}]
  %s6 = inlined_call_operand.vmem [shape: f32[1,128], index: 6, kind: input, shape index: {}]
  %s7 = inlined_call_operand.vmem [shape: f32[1,128], index: 7, kind: input, shape index: {}]
  %s8 = inlined_call_operand.vmem [shape: f32[1,128], index: 8, kind: input, shape index: {}]
  %s9 = inlined_call_operand.hbm [shape: f32[16,128], index: 9, kind: output, shape index: {}]
  %s10 = sld [smem:[#allocation0]]
  $region66: #{tpu_custom_call.1} parent=0
    _
  %s12 = ssub.s32 1, %s10
  %s13 = scalar_select 0, %s12, %s10
  $region1: #{tpu_custom_call.1} parent=0
    #allocation4 [shape = 'u8[16384]{0}', space=vmem, size = 0x4000, scoped, tag = 'input window, operand 0, single buffered']
    #allocation5 [shape = 's32[1]{0}', space=sflag, size = 0x4, scoped, tag = 'scoped memory for tpu_custom_call.1']
    #allocation6 [shape = 's32[1]{0}', space=sflag, size = 0x4, scoped, tag = 'scoped memory for tpu_custom_call.1']
    #allocation7 [shape = 'u8[98304]{0}', space=vmem, size = 0x18000, scoped, tag = 'input window, operand 1, single buffered']
    #allocation8 [shape = 's32[1]{0}', space=sflag, size = 0x4, scoped, tag = 'scoped memory for tpu_custom_call.1']
    #allocation9 [shape = 'u8[196608]{0}', space=vmem, size = 0x30000, scoped, tag = 'input window, operand 2, single buffered']
    #allocation10 [shape = 'u8[65536]{0}', space=vmem, size = 0x10000, scoped, tag = 'input window, operand 3, single buffered']
    #allocation11 [shape = 's32[1]{0}', space=sflag, size = 0x4, scoped, tag = 'scoped memory for tpu_custom_call.1']
    #allocation12 [shape = 'u8[65536]{0}', space=vmem, size = 0x10000, scoped, tag = 'input window, operand 4, single buffered']
    #allocation13 [shape = 'u8[8192]{0}', space=vmem, size = 0x2000, scoped, tag = 'output window, operand 0, single buffered']
    %14 = vsyncpa [#allocation5], 0
    %15 = vsyncpa [#allocation8], 0
    %16 = vsyncpa [#allocation11], 0
    %17 = vsyncpa [#allocation6], 0
    // Predicated region
    $region2: #{tpu_custom_call.1} parent=1 // pred_check
      _
    $region3: #{tpu_custom_call.1} parent=1 // pred_check_branch
      %19 = sbr.rel (0) target = $region5
    $region4: #{tpu_custom_call.1} parent=1 // pred_region
      %21 = vsyncadd [#allocation5], 0
      %s22 = sshll.u32 %s0, 4
      %s23 = int_to_ptr.hbm [resolvable:$true] %s22
      %s24 = sshll.u32 [#allocation4], 4
      %s25 = int_to_ptr.vmem [resolvable:$true] %s24
      %30 = dma.hbm_to_vmem [thread:$0]  %s23, 512, %s25, [#allocation5], 128, 128, 8
    $region5: #{tpu_custom_call.1} parent=1 // pred_fallthru
      _
    // Predicated region
    $region6: #{tpu_custom_call.1} parent=1 // pred_check
      _
    $region7: #{tpu_custom_call.1} parent=1 // pred_check_branch
      %32 = sbr.rel (0) target = $region9
    $region8: #{tpu_custom_call.1} parent=1 // pred_region
      %34 = vsyncadd [#allocation8], 0
      %s35 = sshll.u32 %s1, 4
      %s36 = int_to_ptr.hbm [resolvable:$true] %s35
      %s37 = sshll.u32 [#allocation7], 4
      %s38 = int_to_ptr.vmem [resolvable:$true] %s37
      %43 = dma.hbm_to_vmem [thread:$0]  %s36, 3072, %s38, [#allocation8], 128, 128, 8
    $region9: #{tpu_custom_call.1} parent=1 // pred_fallthru
      _
    // Predicated region
    $region10: #{tpu_custom_call.1} parent=1 // pred_check
      _
    $region11: #{tpu_custom_call.1} parent=1 // pred_check_branch
      %45 = sbr.rel (0) target = $region13
    $region12: #{tpu_custom_call.1} parent=1 // pred_region
      %47 = vsyncadd [#allocation8], 0
      %s48 = sshll.u32 %s2, 4
      %s49 = int_to_ptr.hbm [resolvable:$true] %s48
      %s50 = sshll.u32 [#allocation9], 4
      %s51 = int_to_ptr.vmem [resolvable:$true] %s50
      %56 = dma.hbm_to_vmem [thread:$0]  %s49, 6144, %s51, [#allocation8], 128, 128, 8
    $region13: #{tpu_custom_call.1} parent=1 // pred_fallthru
      _
    // Predicated region
    $region14: #{tpu_custom_call.1} parent=1 // pred_check
      _
    $region15: #{tpu_custom_call.1} parent=1 // pred_check_branch
      %58 = sbr.rel (0) target = $region17
    $region16: #{tpu_custom_call.1} parent=1 // pred_region
      %60 = vsyncadd [#allocation11], 0
      %s61 = sshll.u32 %s3, 4
      %s62 = int_to_ptr.hbm [resolvable:$true] %s61
      %s63 = sshll.u32 [#allocation10], 4
      %s64 = int_to_ptr.vmem [resolvable:$true] %s63
      %69 = dma.hbm_to_vmem [thread:$0]  %s62, 2048, %s64, [#allocation11], 128, 128, 8
    $region17: #{tpu_custom_call.1} parent=1 // pred_fallthru
      _
    // Predicated region
    $region18: #{tpu_custom_call.1} parent=1 // pred_check
      _
    $region19: #{tpu_custom_call.1} parent=1 // pred_check_branch
      %71 = sbr.rel (0) target = $region21
    $region20: #{tpu_custom_call.1} parent=1 // pred_region
      %73 = vsyncadd [#allocation11], 0
      %s74 = sshll.u32 %s4, 4
      %s75 = int_to_ptr.hbm [resolvable:$true] %s74
      %s76 = sshll.u32 [#allocation12], 4
      %s77 = int_to_ptr.vmem [resolvable:$true] %s76
      %82 = dma.hbm_to_vmem [thread:$0]  %s75, 2048, %s77, [#allocation11], 128, 128, 8
    $region21: #{tpu_custom_call.1} parent=1 // pred_fallthru
      _
    // Predicated region
    $region22: #{tpu_custom_call.1} parent=1 // pred_check
      _
    $region23: #{tpu_custom_call.1} parent=1 // pred_check_branch
      %84 = sbr.rel (0) target = $region25
    $region24: #{tpu_custom_call.1} parent=1 // pred_region
      _
    $region25: #{tpu_custom_call.1} parent=1 // pred_fallthru
      _
    // Predicated region
    $region26: #{tpu_custom_call.1} parent=1 // pred_check
      _
    $region27: #{tpu_custom_call.1} parent=1 // pred_check_branch
      %86 = sbr.rel (0) target = $region29
    $region28: #{tpu_custom_call.1} parent=1 // pred_region
      _
    $region29: #{tpu_custom_call.1} parent=1 // pred_fallthru
      _
    // Predicated region
    $region30: #{tpu_custom_call.1} parent=1 // pred_check
      _
    $region31: #{tpu_custom_call.1} parent=1 // pred_check_branch
      %88 = sbr.rel (0) target = $region33
    $region32: #{tpu_custom_call.1} parent=1 // pred_region
      _
    $region33: #{tpu_custom_call.1} parent=1 // pred_fallthru
      _
    // Predicated region
    $region34: #{tpu_custom_call.1} parent=1 // pred_check
      _
    $region35: #{tpu_custom_call.1} parent=1 // pred_check_branch
      %90 = sbr.rel (0) target = $region37
    $region36: #{tpu_custom_call.1} parent=1 // pred_region
      _
    $region37: #{tpu_custom_call.1} parent=1 // pred_fallthru
      _
    // Predicated region
    $region38: #{tpu_custom_call.1} parent=1 // pred_check
      _
    $region39: #{tpu_custom_call.1} parent=1 // pred_check_branch
      %92 = sbr.rel (0) target = $region41
    $region40: #{tpu_custom_call.1} parent=1 // pred_region
      %94 = dma.done [#allocation5], 512
    $region41: #{tpu_custom_call.1} parent=1 // pred_fallthru
      _
    // Predicated region
    $region42: #{tpu_custom_call.1} parent=1 // pred_check
      _
    $region43: #{tpu_custom_call.1} parent=1 // pred_check_branch
      %96 = sbr.rel (0) target = $region45
    $region44: #{tpu_custom_call.1} parent=1 // pred_region
      %98 = dma.done [#allocation8], 3072
    $region45: #{tpu_custom_call.1} parent=1 // pred_fallthru
      _
    // Predicated region
    $region46: #{tpu_custom_call.1} parent=1 // pred_check
      _
    $region47: #{tpu_custom_call.1} parent=1 // pred_check_branch
      %100 = sbr.rel (0) target = $region49
    $region48: #{tpu_custom_call.1} parent=1 // pred_region
      %102 = dma.done [#allocation8], 6144
    $region49: #{tpu_custom_call.1} parent=1 // pred_fallthru
      _
    // Predicated region
    $region50: #{tpu_custom_call.1} parent=1 // pred_check
      _
    $region51: #{tpu_custom_call.1} parent=1 // pred_check_branch
      %104 = sbr.rel (0) target = $region53
    $region52: #{tpu_custom_call.1} parent=1 // pred_region
      %106 = dma.done [#allocation11], 2048
    $region53: #{tpu_custom_call.1} parent=1 // pred_fallthru
      _
    // Predicated region
    $region54: #{tpu_custom_call.1} parent=1 // pred_check
      _
    $region55: #{tpu_custom_call.1} parent=1 // pred_check_branch
      %108 = sbr.rel (0) target = $region57
    $region56: #{tpu_custom_call.1} parent=1 // pred_region
      %110 = dma.done [#allocation11], 2048
    $region57: #{tpu_custom_call.1} parent=1 // pred_fallthru
      _
    %v111 = vld [vmem:[#allocation4] sm:$0xff]
    %v112 = vld [vmem:[#allocation4 + $0x8] sm:$0xff]
    %v113 = vld [vmem:[#allocation4 + $0x10] sm:$0xff]
    %v114 = vld [vmem:[#allocation4 + $0x18] sm:$0xff]
    %vm115 = vcmask 516096
    %116 = vst.msk [vmem:[#allocation2] sm:$0x1] %vm115, 0.0
    %117 = vst.msk [vmem:[#allocation2 + $0x18] sm:$0x1] %vm115, 0.0
    %118 = vst.msk [vmem:[#allocation2 + $0x11] sm:$0x1] %vm115, 0.0
    %119 = vst.msk [vmem:[#allocation2 + $0x29] sm:$0x1] %vm115, 0.0
    %vm120 = vcmask 523264
    %121 = vst.msk [vmem:[#allocation2 + $0x1] sm:$0xff] %vm120, %v111
    %122 = vst.msk [vmem:[#allocation2 + $0x9] sm:$0xff] %vm120, %v112
    %123 = vst.msk [vmem:[#allocation2 + $0x19] sm:$0xff] %vm120, %v113
    %124 = vst.msk [vmem:[#allocation2 + $0x21] sm:$0xff] %vm120, %v114
    %v125 = vld [vmem:[#allocation2] sm:$0xff]
    %v126 = vld [vmem:[#allocation2 + $0x8] sm:$0xff]
    %v127 = vld [vmem:[#allocation2 + $0x18] sm:$0xff]
    %v128 = vld [vmem:[#allocation2 + $0x20] sm:$0xff]
    %v129 = vld [vmem:[#allocation2 + $0x1] sm:$0xff]
    %v130 = vld [vmem:[#allocation2 + $0x9] sm:$0xff]
    %v131 = vld [vmem:[#allocation2 + $0x19] sm:$0xff]
    %v132 = vld [vmem:[#allocation2 + $0x21] sm:$0xff]
    %v133 = vld [vmem:[#allocation2 + $0x2] sm:$0xff]
    %v134 = vld [vmem:[#allocation2 + $0xa] sm:$0xff]
    %v135 = vld [vmem:[#allocation2 + $0x1a] sm:$0xff]
    %v136 = vld [vmem:[#allocation2 + $0x22] sm:$0xff]
    %141 = vrot.lane.b32.xlu0 %v129, 64
    %v142 = vpop.permute.xlu0 %141
    %143 = vrot.lane.b32.xlu0 %v130, 64
    %v144 = vpop.permute.xlu0 %143
    %145 = vrot.lane.b32.xlu0 %v131, 64
    %v146 = vpop.permute.xlu0 %145
    %147 = vrot.lane.b32.xlu0 %v132, 64
    %v148 = vpop.permute.xlu0 %147
    %v153 = vsel %vm120, %v125, %v142
    %v154 = vsel %vm120, %v126, %v144
    %v155 = vsel %vm120, %v127, %v146
    %v156 = vsel %vm120, %v128, %v148
    %v157 = vld [vmem:[#allocation7] sm:$0xff]
    %v158 = vld [vmem:[#allocation7 + $0x8] sm:$0xff]
    %v159 = vld [vmem:[#allocation7 + $0x10] sm:$0xff]
    %v160 = vld [vmem:[#allocation7 + $0x18] sm:$0xff]
    %v161 = vld [vmem:[#allocation7 + $0x20] sm:$0xff]
    %v162 = vld [vmem:[#allocation7 + $0x28] sm:$0xff]
    %v163 = vld [vmem:[#allocation7 + $0x30] sm:$0xff]
    %v164 = vld [vmem:[#allocation7 + $0x38] sm:$0xff]
    %v165 = vld [vmem:[#allocation7 + $0x40] sm:$0xff]
    %v166 = vld [vmem:[#allocation7 + $0x48] sm:$0xff]
    %v167 = vld [vmem:[#allocation7 + $0x50] sm:$0xff]
    %v168 = vld [vmem:[#allocation7 + $0x58] sm:$0xff]
    %v169 = vld [vmem:[#allocation7 + $0x60] sm:$0xff]
    %v170 = vld [vmem:[#allocation7 + $0x68] sm:$0xff]
    %v171 = vld [vmem:[#allocation7 + $0x70] sm:$0xff]
    %v172 = vld [vmem:[#allocation7 + $0x78] sm:$0xff]
    %v173 = vld [vmem:[#allocation7 + $0x80] sm:$0xff]
    %v174 = vld [vmem:[#allocation7 + $0x88] sm:$0xff]
    %v175 = vld [vmem:[#allocation7 + $0x90] sm:$0xff]
    %v176 = vld [vmem:[#allocation7 + $0x98] sm:$0xff]
    %v177 = vld [vmem:[#allocation7 + $0xa0] sm:$0xff]
    %v178 = vld [vmem:[#allocation7 + $0xa8] sm:$0xff]
    %v179 = vld [vmem:[#allocation7 + $0xb0] sm:$0xff]
    %v180 = vld [vmem:[#allocation7 + $0xb8] sm:$0xff]
    %v182 = vsel %vm120, %v133, 0
    %v185 = vsel %vm120, %v134, 0
    %v188 = vsel %vm120, %v135, 0
    %v191 = vsel %vm120, %v136, 0
    %193 = vmatpush.msra.mxu0 %v172
    %194 = vmatpush.msra.mxu0 %v171
    %195 = vmatpush.msra.mxu0 %v170
    %196 = vmatpush.msra.mxu0 %v169
    %197 = vmatpush.msra.mxu0 %v168
    %198 = vmatpush.msra.mxu0 %v167
    %199 = vmatpush.msra.mxu0 %v166
    %200 = vmatpush.msra.mxu0 %v165
    %201 = vmatpush.msra.mxu0 %v164
    %202 = vmatpush.msra.mxu0 %v163
    %203 = vmatpush.msra.mxu0 %v162
    %204 = vmatpush.msra.mxu0 %v161
    %205 = vmatpush.msra.mxu0 %v160
    %206 = vmatpush.msra.mxu0 %v159
    %207 = vmatpush.msra.mxu0 %v158
    %208 = vmatpush.msra.mxu0 %v157
    %209 = vmatmul.f32.gmra.mxu0 %v153
    %v210 = vpop.f32.mrf.mxu0
    %v211 = vadd.f32 0.0, %v210
    %212 = vmatmul.f32.gmra.mxu0 %v154
    %v213 = vpop.f32.mrf.mxu0
    %v214 = vadd.f32 0.0, %v213
    %215 = vmatmul.f32.gmra.mxu0 %v155
    %v216 = vpop.f32.mrf.mxu0
    %v217 = vadd.f32 0.0, %v216
    %218 = vmatmul.f32.gmra.mxu0 %v156
    %v219 = vpop.f32.mrf.mxu0
    %v220 = vadd.f32 0.0, %v219
    %221 = vdwg.mxu0
    %222 = vmatpush.msra.mxu0 0.0
    %223 = vmatpush.msra.mxu0 0.0
    %224 = vmatpush.msra.mxu0 0.0
    %225 = vmatpush.msra.mxu0 0.0
    %226 = vmatpush.msra.mxu0 0.0
    %227 = vmatpush.msra.mxu0 0.0
    %228 = vmatpush.msra.mxu0 0.0
    %229 = vmatpush.msra.mxu0 0.0
    %230 = vmatpush.msra.mxu0 %v180
    %231 = vmatpush.msra.mxu0 %v179
    %232 = vmatpush.msra.mxu0 %v178
    %233 = vmatpush.msra.mxu0 %v177
    %234 = vmatpush.msra.mxu0 %v176
    %235 = vmatpush.msra.mxu0 %v175
    %236 = vmatpush.msra.mxu0 %v174
    %237 = vmatpush.msra.mxu0 %v173
    %238 = vmatmul.f32.gmra.mxu0 %v182
    %v239 = vpop.f32.mrf.mxu0
    %v240 = vadd.f32 %v211, %v239
    %241 = vmatmul.f32.gmra.mxu0 %v185
    %v242 = vpop.f32.mrf.mxu0
    %v243 = vadd.f32 %v214, %v242
    %244 = vmatmul.f32.gmra.mxu0 %v188
    %v245 = vpop.f32.mrf.mxu0
    %v246 = vadd.f32 %v217, %v245
    %247 = vmatmul.f32.gmra.mxu0 %v191
    %v248 = vpop.f32.mrf.mxu0
    %v249 = vadd.f32 %v220, %v248
    %250 = vdwg.mxu0
    %v251 = vld [vmem:[%s5] sm:$0x1]
    %v252 = vld [vmem:[%s6] sm:$0x1]
    %v253 = vadd.f32 %v240, %v243
    %v254 = vadd.f32 %v253, %v246
    %v255 = vadd.f32 %v254, %v249
    %v256 = vrot.slane %v255, 4
    %v257 = vadd.f32 %v255, %v256
    %v258 = vrot.slane %v257, 2
    %v259 = vadd.f32 %v257, %v258
    %v260 = vrot.slane %v259, 1
    %v261 = vadd.f32 %v259, %v260
    %v262 = vmul.f32 %v240, %v240
    %v263 = vmul.f32 %v243, %v243
    %v264 = vmul.f32 %v246, %v246
    %v265 = vmul.f32 %v249, %v249
    %v266 = vadd.f32 %v262, %v263
    %v267 = vadd.f32 %v266, %v264
    %v268 = vadd.f32 %v267, %v265
    %v269 = vrot.slane %v268, 4
    %v270 = vadd.f32 %v268, %v269
    %v271 = vrot.slane %v270, 2
    %v272 = vadd.f32 %v270, %v271
    %v273 = vrot.slane %v272, 1
    %v274 = vadd.f32 %v272, %v273
    %vm275 = vcmask 1040384
    %v276 = vsel %vm275, %v261, %v274
    %v277 = vld [vmem:[#allocation10] sm:$0xff]
    %v278 = vld [vmem:[#allocation10 + $0x8] sm:$0xff]
    %v279 = vld [vmem:[#allocation10 + $0x10] sm:$0xff]
    %v280 = vld [vmem:[#allocation10 + $0x18] sm:$0xff]
    %v281 = vld [vmem:[#allocation10 + $0x20] sm:$0xff]
    %v282 = vld [vmem:[#allocation10 + $0x28] sm:$0xff]
    %v283 = vld [vmem:[#allocation10 + $0x30] sm:$0xff]
    %v284 = vld [vmem:[#allocation10 + $0x38] sm:$0xff]
    %v285 = vld [vmem:[#allocation10 + $0x40] sm:$0xff]
    %v286 = vld [vmem:[#allocation10 + $0x48] sm:$0xff]
    %v287 = vld [vmem:[#allocation10 + $0x50] sm:$0xff]
    %v288 = vld [vmem:[#allocation10 + $0x58] sm:$0xff]
    %v289 = vld [vmem:[#allocation10 + $0x60] sm:$0xff]
    %v290 = vld [vmem:[#allocation10 + $0x68] sm:$0xff]
    %v291 = vld [vmem:[#allocation10 + $0x70] sm:$0xff]
    %v292 = vld [vmem:[#allocation10 + $0x78] sm:$0xff]
    %293 = vmatpush.msra.mxu0 %v292
    %294 = vmatpush.msra.mxu0 %v291
    %295 = vmatpush.msra.mxu0 %v290
    %296 = vmatpush.msra.mxu0 %v289
    %297 = vmatpush.msra.mxu0 %v288
    %298 = vmatpush.msra.mxu0 %v287
    %299 = vmatpush.msra.mxu0 %v286
    %300 = vmatpush.msra.mxu0 %v285
    %301 = vmatpush.msra.mxu0 %v284
    %302 = vmatpush.msra.mxu0 %v283
    %303 = vmatpush.msra.mxu0 %v282
    %304 = vmatpush.msra.mxu0 %v281
    %305 = vmatpush.msra.mxu0 %v280
    %306 = vmatpush.msra.mxu0 %v279
    %307 = vmatpush.msra.mxu0 %v278
    %308 = vmatpush.msra.mxu0 %v277
    %309 = vmatmul.f32.gmra.mxu0 %v276
    %v310 = vpop.f32.mrf.mxu0
    %v311 = vadd.f32 0.0, %v310
    %312 = vdwg.mxu0
    %v313 = vmul.f32 %v311, %v311
    %v315 = vrot.slane %v313, 7
    %v317 = vsub.f32 %v311, %v315
    %v318 = vmax.f32 %v317, 0.0
    %v319 = vadd.f32 %v318, 1e-05
    %v320 = vrsqrt.pop %v319
    %v321 = vmul.f32 %v320, %v319
    %v322 = vmul.f32 %v321, %v320
    %v323 = vmul.f32 0.5, %v322
    %v324 = vsub.f32 1.5, %v323
    %v325 = vmul.f32 %v320, %v324
    %vm326 = vweird.f32 %v319
    %vm327 = vweird.f32 %v320
    %vm328 = vmor %vm326, %vm327
    %v329 = vsel %vm328, %v320, %v325
    %331 = vst [vmem:[#allocation1] sm:$0xff] %v329
    %s332 = scalar_lea.vmem [#allocation1], 1
    %v333 = vld [vmem:[%s332] ss:$9 sm:$0xff]
    %v335 = vmul.f32 %v251, %v333
    %v336 = vmul.f32 %v311, %v335
    %v337 = vsub.f32 %v252, %v336
    %v339 = vperm.slane %v335, 0
    %v341 = vmul.f32 %v240, %v339
    %v342 = vmul.f32 %v243, %v339
    %v343 = vmul.f32 %v246, %v339
    %v344 = vmul.f32 %v249, %v339
    %v346 = vperm.slane %v337, 0
    %v348 = vadd.f32 %v341, %v346
    %v349 = vadd.f32 %v342, %v346
    %v350 = vadd.f32 %v343, %v346
    %v351 = vadd.f32 %v344, %v346
    %v352 = vmax.f32 %v348, 0.0
    %v353 = vmax.f32 %v349, 0.0
    %v354 = vmax.f32 %v350, 0.0
    %v355 = vmax.f32 %v351, 0.0
    %356 = vst [vmem:[#allocation3] sm:$0x1] 0.0
    %357 = vst [vmem:[#allocation3 + $0x18] sm:$0x1] 0.0
    %358 = vst [vmem:[#allocation3 + $0x11] sm:$0x1] 0.0
    %359 = vst [vmem:[#allocation3 + $0x29] sm:$0x1] 0.0
    %360 = vst [vmem:[#allocation3 + $0x1] sm:$0xff] %v352
    %361 = vst [vmem:[#allocation3 + $0x9] sm:$0xff] %v353
    %362 = vst [vmem:[#allocation3 + $0x19] sm:$0xff] %v354
    %363 = vst [vmem:[#allocation3 + $0x21] sm:$0xff] %v355
    %v364 = vld [vmem:[#allocation3] sm:$0xff]
    %v365 = vld [vmem:[#allocation3 + $0x8] sm:$0xff]
    %v366 = vld [vmem:[#allocation3 + $0x18] sm:$0xff]
    %v367 = vld [vmem:[#allocation3 + $0x20] sm:$0xff]
    %v368 = vld [vmem:[#allocation3 + $0x1] sm:$0xff]
    %v369 = vld [vmem:[#allocation3 + $0x9] sm:$0xff]
    %v370 = vld [vmem:[#allocation3 + $0x19] sm:$0xff]
    %v371 = vld [vmem:[#allocation3 + $0x21] sm:$0xff]
    %v372 = vld [vmem:[#allocation3 + $0x2] sm:$0xff]
    %v373 = vld [vmem:[#allocation3 + $0xa] sm:$0xff]
    %v374 = vld [vmem:[#allocation3 + $0x1a] sm:$0xff]
    %v375 = vld [vmem:[#allocation3 + $0x22] sm:$0xff]
    %v376 = vld [vmem:[#allocation9] sm:$0xff]
    %v377 = vld [vmem:[#allocation9 + $0x8] sm:$0xff]
    %v378 = vld [vmem:[#allocation9 + $0x10] sm:$0xff]
    %v379 = vld [vmem:[#allocation9 + $0x18] sm:$0xff]
    %v380 = vld [vmem:[#allocation9 + $0x20] sm:$0xff]
    %v381 = vld [vmem:[#allocation9 + $0x28] sm:$0xff]
    %v382 = vld [vmem:[#allocation9 + $0x30] sm:$0xff]
    %v383 = vld [vmem:[#allocation9 + $0x38] sm:$0xff]
    %v384 = vld [vmem:[#allocation9 + $0x40] sm:$0xff]
    %v385 = vld [vmem:[#allocation9 + $0x48] sm:$0xff]
    %v386 = vld [vmem:[#allocation9 + $0x50] sm:$0xff]
    %v387 = vld [vmem:[#allocation9 + $0x58] sm:$0xff]
    %v388 = vld [vmem:[#allocation9 + $0x60] sm:$0xff]
    %v389 = vld [vmem:[#allocation9 + $0x68] sm:$0xff]
    %v390 = vld [vmem:[#allocation9 + $0x70] sm:$0xff]
    %v391 = vld [vmem:[#allocation9 + $0x78] sm:$0xff]
    %v392 = vld [vmem:[#allocation9 + $0x80] sm:$0xff]
    %v393 = vld [vmem:[#allocation9 + $0x88] sm:$0xff]
    %v394 = vld [vmem:[#allocation9 + $0x90] sm:$0xff]
    %v395 = vld [vmem:[#allocation9 + $0x98] sm:$0xff]
    %v396 = vld [vmem:[#allocation9 + $0xa0] sm:$0xff]
    %v397 = vld [vmem:[#allocation9 + $0xa8] sm:$0xff]
    %v398 = vld [vmem:[#allocation9 + $0xb0] sm:$0xff]
    %v399 = vld [vmem:[#allocation9 + $0xb8] sm:$0xff]
    %v400 = vld [vmem:[#allocation9 + $0xc0] sm:$0xff]
    %v401 = vld [vmem:[#allocation9 + $0xc8] sm:$0xff]
    %v402 = vld [vmem:[#allocation9 + $0xd0] sm:$0xff]
    %v403 = vld [vmem:[#allocation9 + $0xd8] sm:$0xff]
    %v404 = vld [vmem:[#allocation9 + $0xe0] sm:$0xff]
    %v405 = vld [vmem:[#allocation9 + $0xe8] sm:$0xff]
    %v406 = vld [vmem:[#allocation9 + $0xf0] sm:$0xff]
    %v407 = vld [vmem:[#allocation9 + $0xf8] sm:$0xff]
    %v408 = vld [vmem:[#allocation9 + $0x100] sm:$0xff]
    %v409 = vld [vmem:[#allocation9 + $0x108] sm:$0xff]
    %v410 = vld [vmem:[#allocation9 + $0x110] sm:$0xff]
    %v411 = vld [vmem:[#allocation9 + $0x118] sm:$0xff]
    %v412 = vld [vmem:[#allocation9 + $0x120] sm:$0xff]
    %v413 = vld [vmem:[#allocation9 + $0x128] sm:$0xff]
    %v414 = vld [vmem:[#allocation9 + $0x130] sm:$0xff]
    %v415 = vld [vmem:[#allocation9 + $0x138] sm:$0xff]
    %v416 = vld [vmem:[#allocation9 + $0x140] sm:$0xff]
    %v417 = vld [vmem:[#allocation9 + $0x148] sm:$0xff]
    %v418 = vld [vmem:[#allocation9 + $0x150] sm:$0xff]
    %v419 = vld [vmem:[#allocation9 + $0x158] sm:$0xff]
    %v420 = vld [vmem:[#allocation9 + $0x160] sm:$0xff]
    %v421 = vld [vmem:[#allocation9 + $0x168] sm:$0xff]
    %v422 = vld [vmem:[#allocation9 + $0x170] sm:$0xff]
    %v423 = vld [vmem:[#allocation9 + $0x178] sm:$0xff]
    %424 = vmatpush.msra.mxu0 %v391
    %425 = vmatpush.msra.mxu0 %v390
    %426 = vmatpush.msra.mxu0 %v389
    %427 = vmatpush.msra.mxu0 %v388
    %428 = vmatpush.msra.mxu0 %v387
    %429 = vmatpush.msra.mxu0 %v386
    %430 = vmatpush.msra.mxu0 %v385
    %431 = vmatpush.msra.mxu0 %v384
    %432 = vmatpush.msra.mxu0 %v383
    %433 = vmatpush.msra.mxu0 %v382
    %434 = vmatpush.msra.mxu0 %v381
    %435 = vmatpush.msra.mxu0 %v380
    %436 = vmatpush.msra.mxu0 %v379
    %437 = vmatpush.msra.mxu0 %v378
    %438 = vmatpush.msra.mxu0 %v377
    %439 = vmatpush.msra.mxu0 %v376
    %440 = vmatmul.f32.gmra.mxu0 %v364
    %v441 = vpop.f32.mrf.mxu0
    %v442 = vadd.f32 0.0, %v441
    %443 = vmatmul.f32.gmra.mxu0 %v365
    %v444 = vpop.f32.mrf.mxu0
    %v445 = vadd.f32 0.0, %v444
    %446 = vmatmul.f32.gmra.mxu0 %v366
    %v447 = vpop.f32.mrf.mxu0
    %v448 = vadd.f32 0.0, %v447
    %449 = vmatmul.f32.gmra.mxu0 %v367
    %v450 = vpop.f32.mrf.mxu0
    %v451 = vadd.f32 0.0, %v450
    %452 = vdwg.mxu0
    %453 = vmatpush.msra.mxu0 %v407
    %454 = vmatpush.msra.mxu0 %v406
    %455 = vmatpush.msra.mxu0 %v405
    %456 = vmatpush.msra.mxu0 %v404
    %457 = vmatpush.msra.mxu0 %v403
    %458 = vmatpush.msra.mxu0 %v402
    %459 = vmatpush.msra.mxu0 %v401
    %460 = vmatpush.msra.mxu0 %v400
    %461 = vmatpush.msra.mxu0 %v399
    %462 = vmatpush.msra.mxu0 %v398
    %463 = vmatpush.msra.mxu0 %v397
    %464 = vmatpush.msra.mxu0 %v396
    %465 = vmatpush.msra.mxu0 %v395
    %466 = vmatpush.msra.mxu0 %v394
    %467 = vmatpush.msra.mxu0 %v393
    %468 = vmatpush.msra.mxu0 %v392
    %469 = vmatmul.f32.gmra.mxu0 %v368
    %v470 = vpop.f32.mrf.mxu0
    %v471 = vadd.f32 %v442, %v470
    %472 = vmatmul.f32.gmra.mxu0 %v369
    %v473 = vpop.f32.mrf.mxu0
    %v474 = vadd.f32 %v445, %v473
    %475 = vmatmul.f32.gmra.mxu0 %v370
    %v476 = vpop.f32.mrf.mxu0
    %v477 = vadd.f32 %v448, %v476
    %478 = vmatmul.f32.gmra.mxu0 %v371
    %v479 = vpop.f32.mrf.mxu0
    %v480 = vadd.f32 %v451, %v479
    %481 = vdwg.mxu0
    %482 = vmatpush.msra.mxu0 %v423
    %483 = vmatpush.msra.mxu0 %v422
    %484 = vmatpush.msra.mxu0 %v421
    %485 = vmatpush.msra.mxu0 %v420
    %486 = vmatpush.msra.mxu0 %v419
    %487 = vmatpush.msra.mxu0 %v418
    %488 = vmatpush.msra.mxu0 %v417
    %489 = vmatpush.msra.mxu0 %v416
    %490 = vmatpush.msra.mxu0 %v415
    %491 = vmatpush.msra.mxu0 %v414
    %492 = vmatpush.msra.mxu0 %v413
    %493 = vmatpush.msra.mxu0 %v412
    %494 = vmatpush.msra.mxu0 %v411
    %495 = vmatpush.msra.mxu0 %v410
    %496 = vmatpush.msra.mxu0 %v409
    %497 = vmatpush.msra.mxu0 %v408
    %498 = vmatmul.f32.gmra.mxu0 %v372
    %v499 = vpop.f32.mrf.mxu0
    %v500 = vadd.f32 %v471, %v499
    %501 = vmatmul.f32.gmra.mxu0 %v373
    %v502 = vpop.f32.mrf.mxu0
    %v503 = vadd.f32 %v474, %v502
    %504 = vmatmul.f32.gmra.mxu0 %v374
    %v505 = vpop.f32.mrf.mxu0
    %v506 = vadd.f32 %v477, %v505
    %507 = vmatmul.f32.gmra.mxu0 %v375
    %v508 = vpop.f32.mrf.mxu0
    %v509 = vadd.f32 %v480, %v508
    %510 = vdwg.mxu0
    %v511 = vld [vmem:[%s7] sm:$0x1]
    %v512 = vld [vmem:[%s8] sm:$0x1]
    %v513 = vadd.f32 %v500, %v503
    %v514 = vadd.f32 %v513, %v506
    %v515 = vadd.f32 %v514, %v509
    %v516 = vrot.slane %v515, 4
    %v517 = vadd.f32 %v515, %v516
    %v518 = vrot.slane %v517, 2
    %v519 = vadd.f32 %v517, %v518
    %v520 = vrot.slane %v519, 1
    %v521 = vadd.f32 %v519, %v520
    %v522 = vmul.f32 %v500, %v500
    %v523 = vmul.f32 %v503, %v503
    %v524 = vmul.f32 %v506, %v506
    %v525 = vmul.f32 %v509, %v509
    %v526 = vadd.f32 %v522, %v523
    %v527 = vadd.f32 %v526, %v524
    %v528 = vadd.f32 %v527, %v525
    %v529 = vrot.slane %v528, 4
    %v530 = vadd.f32 %v528, %v529
    %v531 = vrot.slane %v530, 2
    %v532 = vadd.f32 %v530, %v531
    %v533 = vrot.slane %v532, 1
    %v534 = vadd.f32 %v532, %v533
    %v535 = vsel %vm275, %v521, %v534
    %v536 = vld [vmem:[#allocation10] sm:$0xff]
    %v537 = vld [vmem:[#allocation10 + $0x8] sm:$0xff]
    %v538 = vld [vmem:[#allocation10 + $0x10] sm:$0xff]
    %v539 = vld [vmem:[#allocation10 + $0x18] sm:$0xff]
    %v540 = vld [vmem:[#allocation10 + $0x20] sm:$0xff]
    %v541 = vld [vmem:[#allocation10 + $0x28] sm:$0xff]
    %v542 = vld [vmem:[#allocation10 + $0x30] sm:$0xff]
    %v543 = vld [vmem:[#allocation10 + $0x38] sm:$0xff]
    %v544 = vld [vmem:[#allocation10 + $0x40] sm:$0xff]
    %v545 = vld [vmem:[#allocation10 + $0x48] sm:$0xff]
    %v546 = vld [vmem:[#allocation10 + $0x50] sm:$0xff]
    %v547 = vld [vmem:[#allocation10 + $0x58] sm:$0xff]
    %v548 = vld [vmem:[#allocation10 + $0x60] sm:$0xff]
    %v549 = vld [vmem:[#allocation10 + $0x68] sm:$0xff]
    %v550 = vld [vmem:[#allocation10 + $0x70] sm:$0xff]
    %v551 = vld [vmem:[#allocation10 + $0x78] sm:$0xff]
    %552 = vmatpush.msra.mxu0 %v551
    %553 = vmatpush.msra.mxu0 %v550
    %554 = vmatpush.msra.mxu0 %v549
    %555 = vmatpush.msra.mxu0 %v548
    %556 = vmatpush.msra.mxu0 %v547
    %557 = vmatpush.msra.mxu0 %v546
    %558 = vmatpush.msra.mxu0 %v545
    %559 = vmatpush.msra.mxu0 %v544
    %560 = vmatpush.msra.mxu0 %v543
    %561 = vmatpush.msra.mxu0 %v542
    %562 = vmatpush.msra.mxu0 %v541
    %563 = vmatpush.msra.mxu0 %v540
    %564 = vmatpush.msra.mxu0 %v539
    %565 = vmatpush.msra.mxu0 %v538
    %566 = vmatpush.msra.mxu0 %v537
    %567 = vmatpush.msra.mxu0 %v536
    %568 = vmatmul.f32.gmra.mxu0 %v535
    %v569 = vpop.f32.mrf.mxu0
    %v570 = vadd.f32 0.0, %v569
    %571 = vdwg.mxu0
    %v572 = vmul.f32 %v570, %v570
    %v574 = vrot.slane %v572, 7
    %v576 = vsub.f32 %v570, %v574
    %v577 = vmax.f32 %v576, 0.0
    %v578 = vadd.f32 %v577, 1e-05
    %v579 = vrsqrt.pop %v578
    %v580 = vmul.f32 %v579, %v578
    %v581 = vmul.f32 %v580, %v579
    %v582 = vmul.f32 0.5, %v581
    %v583 = vsub.f32 1.5, %v582
    %v584 = vmul.f32 %v579, %v583
    %vm585 = vweird.f32 %v578
    %vm586 = vweird.f32 %v579
    %vm587 = vmor %vm585, %vm586
    %v588 = vsel %vm587, %v579, %v584
    %590 = vst [vmem:[#allocation1] sm:$0xff] %v588
    %s591 = scalar_lea.vmem [#allocation1], 1
    %v592 = vld [vmem:[%s591] ss:$9 sm:$0xff]
    %v594 = vmul.f32 %v511, %v592
    %v595 = vmul.f32 %v570, %v594
    %v596 = vsub.f32 %v512, %v595
    %v598 = vperm.slane %v594, 0
    %v600 = vmul.f32 %v500, %v598
    %v601 = vmul.f32 %v503, %v598
    %v602 = vmul.f32 %v506, %v598
    %v603 = vmul.f32 %v509, %v598
    %v605 = vperm.slane %v596, 0
    %v607 = vadd.f32 %v600, %v605
    %v608 = vadd.f32 %v601, %v605
    %v609 = vadd.f32 %v602, %v605
    %v610 = vadd.f32 %v603, %v605
    %v611 = vmax.f32 %v607, 0.0
    %v612 = vmax.f32 %v608, 0.0
    %v613 = vmax.f32 %v609, 0.0
    %v614 = vmax.f32 %v610, 0.0
    %v619 = vrot.slane %v611, 2
    %v620 = vrot.slane %v611, 4
    %v621 = vrot.slane %v611, 6
    %v622 = vrot.slane %v612, 2
    %v623 = vrot.slane %v612, 4
    %v624 = vrot.slane %v612, 6
    %v625 = vrot.slane %v613, 2
    %v626 = vrot.slane %v613, 4
    %v627 = vrot.slane %v613, 6
    %v628 = vrot.slane %v614, 2
    %v629 = vrot.slane %v614, 4
    %v630 = vrot.slane %v614, 6
    %vm643 = vcmask 1041408
    %v644 = vsel %vm643, %v611, 0.0
    %v645 = vrot.slane %v644, 4
    %v646 = vadd.f32 %v644, %v645
    %v647 = vrot.slane %v646, 2
    %v648 = vadd.f32 %v646, %v647
    %v649 = vrot.slane %v648, 1
    %v650 = vadd.f32 %v648, %v649
    %v651 = vsel %vm643, %v619, 0.0
    %v652 = vrot.slane %v651, 4
    %v653 = vadd.f32 %v651, %v652
    %v654 = vrot.slane %v653, 2
    %v655 = vadd.f32 %v653, %v654
    %v656 = vrot.slane %v655, 1
    %v657 = vadd.f32 %v655, %v656
    %v658 = vsel %vm643, %v620, 0.0
    %v659 = vrot.slane %v658, 4
    %v660 = vadd.f32 %v658, %v659
    %v661 = vrot.slane %v660, 2
    %v662 = vadd.f32 %v660, %v661
    %v663 = vrot.slane %v662, 1
    %v664 = vadd.f32 %v662, %v663
    %v665 = vsel %vm643, %v621, 0.0
    %v666 = vrot.slane %v665, 4
    %v667 = vadd.f32 %v665, %v666
    %v668 = vrot.slane %v667, 2
    %v669 = vadd.f32 %v667, %v668
    %v670 = vrot.slane %v669, 1
    %v671 = vadd.f32 %v669, %v670
    %v672 = vsel %vm643, %v612, 0.0
    %v673 = vrot.slane %v672, 4
    %v674 = vadd.f32 %v672, %v673
    %v675 = vrot.slane %v674, 2
    %v676 = vadd.f32 %v674, %v675
    %v677 = vrot.slane %v676, 1
    %v678 = vadd.f32 %v676, %v677
    %v679 = vsel %vm643, %v622, 0.0
    %v680 = vrot.slane %v679, 4
    %v681 = vadd.f32 %v679, %v680
    %v682 = vrot.slane %v681, 2
    %v683 = vadd.f32 %v681, %v682
    %v684 = vrot.slane %v683, 1
    %v685 = vadd.f32 %v683, %v684
    %v686 = vsel %vm643, %v623, 0.0
    %v687 = vrot.slane %v686, 4
    %v688 = vadd.f32 %v686, %v687
    %v689 = vrot.slane %v688, 2
    %v690 = vadd.f32 %v688, %v689
    %v691 = vrot.slane %v690, 1
    %v692 = vadd.f32 %v690, %v691
    %v693 = vsel %vm643, %v624, 0.0
    %v694 = vrot.slane %v693, 4
    %v695 = vadd.f32 %v693, %v694
    %v696 = vrot.slane %v695, 2
    %v697 = vadd.f32 %v695, %v696
    %v698 = vrot.slane %v697, 1
    %v699 = vadd.f32 %v697, %v698
    %v700 = vsel %vm643, %v613, 0.0
    %v701 = vrot.slane %v700, 4
    %v702 = vadd.f32 %v700, %v701
    %v703 = vrot.slane %v702, 2
    %v704 = vadd.f32 %v702, %v703
    %v705 = vrot.slane %v704, 1
    %v706 = vadd.f32 %v704, %v705
    %v707 = vsel %vm643, %v625, 0.0
    %v708 = vrot.slane %v707, 4
    %v709 = vadd.f32 %v707, %v708
    %v710 = vrot.slane %v709, 2
    %v711 = vadd.f32 %v709, %v710
    %v712 = vrot.slane %v711, 1
    %v713 = vadd.f32 %v711, %v712
    %v714 = vsel %vm643, %v626, 0.0
    %v715 = vrot.slane %v714, 4
    %v716 = vadd.f32 %v714, %v715
    %v717 = vrot.slane %v716, 2
    %v718 = vadd.f32 %v716, %v717
    %v719 = vrot.slane %v718, 1
    %v720 = vadd.f32 %v718, %v719
    %v721 = vsel %vm643, %v627, 0.0
    %v722 = vrot.slane %v721, 4
    %v723 = vadd.f32 %v721, %v722
    %v724 = vrot.slane %v723, 2
    %v725 = vadd.f32 %v723, %v724
    %v726 = vrot.slane %v725, 1
    %v727 = vadd.f32 %v725, %v726
    %v728 = vsel %vm643, %v614, 0.0
    %v729 = vrot.slane %v728, 4
    %v730 = vadd.f32 %v728, %v729
    %v731 = vrot.slane %v730, 2
    %v732 = vadd.f32 %v730, %v731
    %v733 = vrot.slane %v732, 1
    %v734 = vadd.f32 %v732, %v733
    %v735 = vsel %vm643, %v628, 0.0
    %v736 = vrot.slane %v735, 4
    %v737 = vadd.f32 %v735, %v736
    %v738 = vrot.slane %v737, 2
    %v739 = vadd.f32 %v737, %v738
    %v740 = vrot.slane %v739, 1
    %v741 = vadd.f32 %v739, %v740
    %v742 = vsel %vm643, %v629, 0.0
    %v743 = vrot.slane %v742, 4
    %v744 = vadd.f32 %v742, %v743
    %v745 = vrot.slane %v744, 2
    %v746 = vadd.f32 %v744, %v745
    %v747 = vrot.slane %v746, 1
    %v748 = vadd.f32 %v746, %v747
    %v749 = vsel %vm643, %v630, 0.0
    %v750 = vrot.slane %v749, 4
    %v751 = vadd.f32 %v749, %v750
    %v752 = vrot.slane %v751, 2
    %v753 = vadd.f32 %v751, %v752
    %v754 = vrot.slane %v753, 1
    %v755 = vadd.f32 %v753, %v754
    %v756 = vld [vmem:[#allocation12] sm:$0xff]
    %v757 = vld [vmem:[#allocation12 + $0x8] sm:$0xff]
    %v758 = vld [vmem:[#allocation12 + $0x10] sm:$0xff]
    %v759 = vld [vmem:[#allocation12 + $0x18] sm:$0xff]
    %v760 = vld [vmem:[#allocation12 + $0x20] sm:$0xff]
    %v761 = vld [vmem:[#allocation12 + $0x28] sm:$0xff]
    %v762 = vld [vmem:[#allocation12 + $0x30] sm:$0xff]
    %v763 = vld [vmem:[#allocation12 + $0x38] sm:$0xff]
    %v764 = vld [vmem:[#allocation12 + $0x40] sm:$0xff]
    %v765 = vld [vmem:[#allocation12 + $0x48] sm:$0xff]
    %v766 = vld [vmem:[#allocation12 + $0x50] sm:$0xff]
    %v767 = vld [vmem:[#allocation12 + $0x58] sm:$0xff]
    %v768 = vld [vmem:[#allocation12 + $0x60] sm:$0xff]
    %v769 = vld [vmem:[#allocation12 + $0x68] sm:$0xff]
    %v770 = vld [vmem:[#allocation12 + $0x70] sm:$0xff]
    %v771 = vld [vmem:[#allocation12 + $0x78] sm:$0xff]
    %vm788 = vcmask 1041409
    %v789 = vsel %vm788, %v657, %v650
    %vm790 = vcmask 1042434
    %v791 = vsel %vm790, %v664, %v789
    %vm792 = vcmask 1043459
    %v793 = vsel %vm792, %v671, %v791
    %vm794 = vcmask 1044484
    %v795 = vsel %vm794, %v678, %v793
    %vm796 = vcmask 1045509
    %v797 = vsel %vm796, %v685, %v795
    %vm798 = vcmask 1046534
    %v799 = vsel %vm798, %v692, %v797
    %vm800 = vcmask 1047559
    %v801 = vsel %vm800, %v699, %v799
    %v802 = vsel %vm788, %v713, %v706
    %v803 = vsel %vm790, %v720, %v802
    %v804 = vsel %vm792, %v727, %v803
    %v805 = vsel %vm794, %v734, %v804
    %v806 = vsel %vm796, %v741, %v805
    %v807 = vsel %vm798, %v748, %v806
    %v808 = vsel %vm800, %v755, %v807
    %811 = vmatpush.msra.mxu0 %v771
    %812 = vmatpush.msra.mxu0 %v770
    %813 = vmatpush.msra.mxu0 %v769
    %814 = vmatpush.msra.mxu0 %v768
    %815 = vmatpush.msra.mxu0 %v767
    %816 = vmatpush.msra.mxu0 %v766
    %817 = vmatpush.msra.mxu0 %v765
    %818 = vmatpush.msra.mxu0 %v764
    %819 = vmatpush.msra.mxu0 %v763
    %820 = vmatpush.msra.mxu0 %v762
    %821 = vmatpush.msra.mxu0 %v761
    %822 = vmatpush.msra.mxu0 %v760
    %823 = vmatpush.msra.mxu0 %v759
    %824 = vmatpush.msra.mxu0 %v758
    %825 = vmatpush.msra.mxu0 %v757
    %826 = vmatpush.msra.mxu0 %v756
    %827 = vmatmul.f32.gmra.mxu0 %v801
    %v828 = vpop.f32.mrf.mxu0
    %v829 = vadd.f32 0.0, %v828
    %830 = vmatmul.f32.gmra.mxu0 %v808
    %v831 = vpop.f32.mrf.mxu0
    %v832 = vadd.f32 0.0, %v831
    %833 = vdwg.mxu0
    %834 = vst [vmem:[#allocation13] sm:$0xff] %v829
    %835 = vst [vmem:[#allocation13 + $0x8] sm:$0xff] %v832
    // Predicated region
    $region58: #{tpu_custom_call.1} parent=1 // pred_check
      _
    $region59: #{tpu_custom_call.1} parent=1 // pred_check_branch
      %837 = sbr.rel (0) target = $region61
    $region60: #{tpu_custom_call.1} parent=1 // pred_region
      %839 = vsyncadd [#allocation6], 0
      %s840 = sshll.u32 [#allocation13], 4
      %s841 = int_to_ptr.vmem [resolvable:$true] %s840
      %s842 = sshll.u32 %s9, 4
      %s843 = int_to_ptr.hbm [resolvable:$true] %s842
      %848 = dma.vmem_to_hbm [thread:$0]  %s841, 256, %s843, [#allocation6], 128, 128, 8
    $region61: #{tpu_custom_call.1} parent=1 // pred_fallthru
      _
    // Predicated region
    $region62: #{tpu_custom_call.1} parent=1 // pred_check
      _
    $region63: #{tpu_custom_call.1} parent=1 // pred_check_branch
      %850 = sbr.rel (0) target = $region65
    $region64: #{tpu_custom_call.1} parent=1 // pred_region
      %852 = dma.done [#allocation6], 256
    $region65: #{tpu_custom_call.1} parent=1 // pred_fallthru
      _
    %853 = vsyncpa [#allocation5], 1
    %854 = vsyncpa [#allocation8], 1
    %855 = vsyncpa [#allocation11], 1
    %856 = vsyncpa [#allocation6], 1

</llo_original>
